<compile_context>
chip_gen: v7x
topology: tpu7x:2x2x1
jax: 0.10.0
libtpu: 0.0.40
codegen_flags: <defaults>
</compile_context>

<pallas_src>
import jax
import jax.numpy as jnp
from jax.experimental import pallas as pl
from jax.experimental.pallas import tpu as pltpu


def mlp_kernel(xT_ref, w1T_ref, b1T_ref, w2T_ref, b2T_ref, oT_ref):
    # xT:  (10, TB) compute_dtype   w1T: (15, 10) compute_dtype  b1T: (15, 1) f32
    # w2T: (2, 15)  compute_dtype   b2T: (2, 1)  f32             oT:  (2, TB) f32
    xT = xT_ref[...]
    # h^T = W1^T @ x^T + b1  -> (15, TB) f32, lane-dense over the batch axis.
    h = jnp.dot(w1T_ref[...], xT, preferred_element_type=jnp.float32) + b1T_ref[...]
    h = jnp.maximum(h, 0.0)                       # ReLU (f32 on the VPU)
    h = h.astype(w2T_ref.dtype)                   # back to compute dtype for the MXU
    # y^T = W2^T @ h^T + b2  -> (2, TB) f32
    y = jnp.dot(w2T_ref[...], h, preferred_element_type=jnp.float32) + b2T_ref[...]
    oT_ref[...] = y.astype(oT_ref.dtype)


def _round_up(n, m):
    return ((n + m - 1) // m) * m


def mlp_forward(x, w1, b1, w2, b2, *, tb=32768, compute_dtype=jnp.bfloat16):
    """y = relu(x @ w1 + b1) @ w2 + b2, x: (B, 10) -> (B, 2) float32."""
    B, in_f = x.shape
    hid_f = w1.shape[1]
    out_f = w2.shape[1]

    # Lane tile: always a multiple of 128 (lane-dense invariant), capped by the
    # padded batch. If the whole batch fits in one tile but is >= 256 rows,
    # split into 2 tiles so both v7x TensorCores get work.
    tb = _round_up(max(tb, 128), 128)
    b128 = _round_up(B, 128)
    if b128 > tb:
        TB = tb
        B_pad = _round_up(B, TB)
    elif b128 >= 256:
        TB = _round_up(b128 // 2, 128)
        B_pad = 2 * TB
    else:
        TB = b128
        B_pad = b128
    grid = (B_pad // TB,)

    # Batch on the lane (last) axis; single fusible transpose+cast+pad so XLA
    # can fold it into the pallas_call input DMA (allow_input_fusion below).
    xT = jnp.pad(x.T.astype(compute_dtype), ((0, 0), (0, B_pad - B)))
    w1T = w1.T.astype(compute_dtype)              # (15, 10)
    b1T = b1.astype(jnp.float32).reshape(hid_f, 1)
    w2T = w2.T.astype(compute_dtype)              # (2, 15)
    b2T = b2.astype(jnp.float32).reshape(out_f, 1)

    yT = pl.pallas_call(
        mlp_kernel,
        out_shape=jax.ShapeDtypeStruct((out_f, B_pad), jnp.float32),
        grid_spec=pl.GridSpec(
            grid=grid,
            in_specs=[
                # Batch-tiled activation input (streamed).
                pl.BlockSpec((in_f, TB), lambda i: (0, i)),
                # Weights / biases: constant block index -> resident in VMEM.
                pl.BlockSpec((hid_f, in_f), lambda i: (0, 0)),
                pl.BlockSpec((hid_f, 1), lambda i: (0, 0)),
                pl.BlockSpec((out_f, hid_f), lambda i: (0, 0)),
                pl.BlockSpec((out_f, 1), lambda i: (0, 0)),
            ],
            out_specs=pl.BlockSpec((out_f, TB), lambda i: (0, i)),
        ),
        compiler_params=pltpu.CompilerParams(
            # Pure data-parallel batch axis: v7x shards it across its 2 TCs.
            dimension_semantics=("parallel",),
            # Headroom for the larger tiles; also covers v5e's 16 MiB default.
            vmem_limit_bytes=32 * 1024 * 1024,
            # Let XLA fuse the transpose/cast/pad producer into the x input.
            allow_input_fusion=[True, False, False, False, False],
        ),
    )(xT, w1T, b1T, w2T, b2T)

    # Back to (B, 2) row-major; drop padded batch columns.
    return yT[:, :B].T


def init_params(key):
    # Deterministic init mimicking nn.Linear's uniform(-1/sqrt(fan_in), 1/sqrt(fan_in)).
    k1, k2, k3, k4 = jax.random.split(key, 4)
    in1, out1 = 10, 15
    in2, out2 = 15, 2
    lim1 = 1.0 / jnp.sqrt(in1)
    lim2 = 1.0 / jnp.sqrt(in2)
    w1 = jax.random.uniform(k1, (in1, out1), jnp.float32, -lim1, lim1)
    b1 = jax.random.uniform(k2, (out1,), jnp.float32, -lim1, lim1)
    w2 = jax.random.uniform(k3, (in2, out2), jnp.float32, -lim2, lim2)
    b2 = jax.random.uniform(k4, (out2,), jnp.float32, -lim2, lim2)
    return w1, b1, w2, b2


if __name__ == "__main__":
    key = jax.random.PRNGKey(0)
    kx, kp = jax.random.split(key)

    B = 8
    x = jax.random.normal(kx, (B, 10), jnp.float32)
    w1, b1, w2, b2 = init_params(kp)

    out = mlp_forward(x, w1, b1, w2, b2)
    out = jax.block_until_ready(out)

    # Reference check in plain JAX (f32). Tolerance accounts for the bf16 MXU
    # inputs (accumulation is f32); pass compute_dtype=jnp.float32 for tighter.
    ref = jnp.maximum(x @ w1 + b1, 0.0) @ w2 + b2
    assert out.shape == (B, 2)
    assert jnp.allclose(out, ref, atol=5e-2, rtol=5e-2)

    print("KERNEL_OK")
</pallas_src>

<mosaic_0001>
module attributes {stable_mosaic.version = 11 : i64} {
  func.func @mlp_kernel(%arg0: i32, %arg1: memref<10x128xbf16, #tpu.memory_space<vmem>>, %arg2: memref<15x10xbf16, #tpu.memory_space<vmem>>, %arg3: memref<15x1xf32, #tpu.memory_space<vmem>>, %arg4: memref<2x15xbf16, #tpu.memory_space<vmem>>, %arg5: memref<2x1xf32, #tpu.memory_space<vmem>>, %arg6: memref<2x128xf32, #tpu.memory_space<vmem>>) attributes {dimension_semantics = [#tpu.dimension_semantics<parallel>], iteration_bounds = array<i64: 1>, scalar_prefetch = 0 : i64, scratch_operands = 0 : i64, tpu.core_type = #tpu.core_type<tc>, window_params = [{transform_indices = @transform_0, window_bounds = array<i64: 10, 128>}, {pipeline_mode = #tpu.pipeline_mode<synchronous>, transform_indices = @transform_1, window_bounds = array<i64: 15, 10>}, {pipeline_mode = #tpu.pipeline_mode<synchronous>, transform_indices = @transform_2, window_bounds = array<i64: 15, 1>}, {pipeline_mode = #tpu.pipeline_mode<synchronous>, transform_indices = @transform_3, window_bounds = array<i64: 2, 15>}, {pipeline_mode = #tpu.pipeline_mode<synchronous>, transform_indices = @transform_4, window_bounds = array<i64: 2, 1>}, {transform_indices = @transform_5, window_bounds = array<i64: 2, 128>}]} {
    %c0 = arith.constant 0 : index
    %c0_0 = arith.constant 0 : index
    %0 = vector.load %arg1[%c0, %c0_0] : memref<10x128xbf16, #tpu.memory_space<vmem>>, vector<10x128xbf16>
    %c0_1 = arith.constant 0 : index
    %c0_2 = arith.constant 0 : index
    %1 = vector.load %arg2[%c0_1, %c0_2] : memref<15x10xbf16, #tpu.memory_space<vmem>>, vector<15x10xbf16>
    %cst = arith.constant dense<0.000000e+00> : vector<15x128xf32>
    %2 = tpu.matmul %1, %0, %cst {dimension_numbers = #tpu.dot_dimension_numbers<[1], [0], [0], [1], [0, 0, 1, 1], [], []>} : vector<15x10xbf16>, vector<10x128xbf16>, vector<15x128xf32> -> vector<15x128xf32>
    %c0_3 = arith.constant 0 : index
    %c0_4 = arith.constant 0 : index
    %3 = vector.load %arg3[%c0_3, %c0_4] : memref<15x1xf32, #tpu.memory_space<vmem>>, vector<15x1xf32>
    %4 = vector.broadcast %3 : vector<15x1xf32> to vector<15x128xf32>
    %5 = arith.addf %2, %4 : vector<15x128xf32>
    %cst_5 = arith.constant 0.000000e+00 : f32
    %6 = vector.broadcast %cst_5 : f32 to vector<15x128xf32>
    %7 = arith.maximumf %5, %6 : vector<15x128xf32>
    %8 = arith.truncf %7 : vector<15x128xf32> to vector<15x128xbf16>
    %c0_6 = arith.constant 0 : index
    %c0_7 = arith.constant 0 : index
    %9 = vector.load %arg4[%c0_6, %c0_7] : memref<2x15xbf16, #tpu.memory_space<vmem>>, vector<2x15xbf16>
    %cst_8 = arith.constant dense<0.000000e+00> : vector<2x128xf32>
    %10 = tpu.matmul %9, %8, %cst_8 {dimension_numbers = #tpu.dot_dimension_numbers<[1], [0], [0], [1], [0, 0, 1, 1], [], []>} : vector<2x15xbf16>, vector<15x128xbf16>, vector<2x128xf32> -> vector<2x128xf32>
    %c0_9 = arith.constant 0 : index
    %c0_10 = arith.constant 0 : index
    %11 = vector.load %arg5[%c0_9, %c0_10] : memref<2x1xf32, #tpu.memory_space<vmem>>, vector<2x1xf32>
    %12 = vector.broadcast %11 : vector<2x1xf32> to vector<2x128xf32>
    %13 = arith.addf %10, %12 : vector<2x128xf32>
    %c0_11 = arith.constant 0 : index
    %c0_12 = arith.constant 0 : index
    %14 = vector.load %arg6[%c0_11, %c0_12] : memref<2x128xf32, #tpu.memory_space<vmem>>, vector<2x128xf32>
    tpu.vector_store %arg6[%c0_11, %c0_12], %13 {strides = array<i32>} : memref<2x128xf32, #tpu.memory_space<vmem>>, vector<2x128xf32>,
    return
  }
  func.func @transform_0(%arg0: i32) -> (i32, i32) {
    %c0_i32 = arith.constant 0 : i32
    %c0_i32_0 = arith.constant 0 : i32
    return %c0_i32, %arg0 : i32, i32
  }
  func.func @transform_1(%arg0: i32) -> (i32, i32) {
    %c0_i32 = arith.constant 0 : i32
    %c0_i32_0 = arith.constant 0 : i32
    %c0_i32_1 = arith.constant 0 : i32
    return %c0_i32, %c0_i32_0 : i32, i32
  }
  func.func @transform_2(%arg0: i32) -> (i32, i32) {
    %c0_i32 = arith.constant 0 : i32
    %c0_i32_0 = arith.constant 0 : i32
    %c0_i32_1 = arith.constant 0 : i32
    return %c0_i32, %c0_i32_0 : i32, i32
  }
  func.func @transform_3(%arg0: i32) -> (i32, i32) {
    %c0_i32 = arith.constant 0 : i32
    %c0_i32_0 = arith.constant 0 : i32
    %c0_i32_1 = arith.constant 0 : i32
    return %c0_i32, %c0_i32_0 : i32, i32
  }
  func.func @transform_4(%arg0: i32) -> (i32, i32) {
    %c0_i32 = arith.constant 0 : i32
    %c0_i32_0 = arith.constant 0 : i32
    %c0_i32_1 = arith.constant 0 : i32
    return %c0_i32, %c0_i32_0 : i32, i32
  }
  func.func @transform_5(%arg0: i32) -> (i32, i32) {
    %c0_i32 = arith.constant 0 : i32
    %c0_i32_0 = arith.constant 0 : i32
    return %c0_i32, %arg0 : i32, i32
  }
}

</mosaic_0001>

<llo_original>
// kernel: tpu_custom_call.1
$region0: #{tpu_custom_call.1}
  #allocation0 [shape = 'u32[]', space=smem, size = 0x4, offset = 0x4, fixed_abs, tag = 'smem constant byte address 0x4 - core index']
  #allocation1 [shape = 'u32[144,128]{1,0:T(1,128)}', space=vmem, size = 0x12000, scoped, tag = 'internal scratch']
  %s0 = inlined_call_operand.vmem [shape: bf16[10,128], index: 0, kind: input, shape index: {}]
  %s1 = inlined_call_operand.vmem [shape: bf16[15,10], index: 1, kind: input, shape index: {}]
  %s2 = inlined_call_operand.vmem [shape: f32[15,1], index: 2, kind: input, shape index: {}]
  %s3 = inlined_call_operand.vmem [shape: bf16[2,15], index: 3, kind: input, shape index: {}]
  %s4 = inlined_call_operand.vmem [shape: f32[2,1], index: 4, kind: input, shape index: {}]
  %s5 = inlined_call_operand.hbm [shape: f32[2,128], index: 5, kind: output, shape index: {}]
  %s6 = sld [smem:[#allocation0]]
  $region30: #{tpu_custom_call.1} parent=0
    _
  %s8 = ssub.s32 1, %s6
  %s9 = scalar_select 0, %s8, %s6
  $region1: #{tpu_custom_call.1} parent=0
    #allocation2 [shape = 'u8[1024]{0}', space=vmem, size = 0x400, scoped, tag = 'output window, operand 0, single buffered']
    #allocation3 [shape = 's32[1]{0}', space=sflag, size = 0x4, scoped, tag = 'scoped memory for tpu_custom_call.1']
    %10 = vsyncpa [#allocation3], 0
    // Predicated region
    $region2: #{tpu_custom_call.1} parent=1 // pred_check
      _
    $region3: #{tpu_custom_call.1} parent=1 // pred_check_branch
      %12 = sbr.rel (0) target = $region5
    $region4: #{tpu_custom_call.1} parent=1 // pred_region
      _
    $region5: #{tpu_custom_call.1} parent=1 // pred_fallthru
      _
    // Predicated region
    $region6: #{tpu_custom_call.1} parent=1 // pred_check
      _
    $region7: #{tpu_custom_call.1} parent=1 // pred_check_branch
      %14 = sbr.rel (0) target = $region9
    $region8: #{tpu_custom_call.1} parent=1 // pred_region
      _
    $region9: #{tpu_custom_call.1} parent=1 // pred_fallthru
      _
    // Predicated region
    $region10: #{tpu_custom_call.1} parent=1 // pred_check
      _
    $region11: #{tpu_custom_call.1} parent=1 // pred_check_branch
      %16 = sbr.rel (0) target = $region13
    $region12: #{tpu_custom_call.1} parent=1 // pred_region
      _
    $region13: #{tpu_custom_call.1} parent=1 // pred_fallthru
      _
    // Predicated region
    $region14: #{tpu_custom_call.1} parent=1 // pred_check
      _
    $region15: #{tpu_custom_call.1} parent=1 // pred_check_branch
      %18 = sbr.rel (0) target = $region17
    $region16: #{tpu_custom_call.1} parent=1 // pred_region
      _
    $region17: #{tpu_custom_call.1} parent=1 // pred_fallthru
      _
    // Predicated region
    $region18: #{tpu_custom_call.1} parent=1 // pred_check
      _
    $region19: #{tpu_custom_call.1} parent=1 // pred_check_branch
      %20 = sbr.rel (0) target = $region21
    $region20: #{tpu_custom_call.1} parent=1 // pred_region
      _
    $region21: #{tpu_custom_call.1} parent=1 // pred_fallthru
      _
    %v22 = vld [vmem:[%s0] sm:$0xf]
    %v23 = vld [vmem:[%s0 + $0x4] sm:$0x1]
    %v24 = vld [vmem:[%s1] sm:$0xf]
    %v25 = vld [vmem:[%s1 + $0x4] sm:$0xf]
    %v26 = vld [vmem:[%s2] sm:$0xff]
    %v27 = vld [vmem:[%s2 + $0x8] sm:$0x7f]
    %29 = vset.pattern.permute.xlu0 0
    %30 = vperm.xlu0 %29, %v26
    %v31 = vpop.permute.xlu0 %30
    %34 = vset.pattern.permute.xlu0 0
    %35 = vperm.xlu0 %34, %v27
    %v36 = vpop.permute.xlu0 %35
    %v40 = vunpack.c.l.b16 %v24
    %v41 = vunpack.c.l.b16 %v25
    %v42 = vpack.c.b16 %v41, %v40
    %v45 = vunpack.c.l.b16 %v22
    %v46 = vunpack.c.l.b16 %v23
    %v47 = vpack.c.b16 %v46, %v45
    %vm48 = vcmask 80896
    %v50 = vsel %vm48, %v42, 0
    %vm52 = vcmask 1044480
    %v54 = vsel %vm52, %v47, 0
    %56 = vmatprep.subr.bf16.mxu0 0
    %57 = vmatpush1.bf16.msra.mxu0 %v54
    %58 = vmatprep.subr.bf16.mxu0 0
    %59 = vmatpush1.bf16.msra.mxu0 0
    %60 = vmatprep.subr.bf16.mxu0 0
    %61 = vmatpush1.bf16.msra.mxu0 0
    %62 = vmatprep.subr.bf16.mxu0 0
    %63 = vmatpush1.bf16.msra.mxu0 0
    %64 = vmatprep.subr.bf16.mxu0 0
    %65 = vmatpush1.bf16.msra.mxu0 0
    %66 = vmatprep.subr.bf16.mxu0 0
    %67 = vmatpush1.bf16.msra.mxu0 0
    %68 = vmatprep.subr.bf16.mxu0 0
    %69 = vmatpush1.bf16.msra.mxu0 0
    %70 = vmatprep.subr.bf16.mxu0 0
    %71 = vmatpush1.bf16.msra.mxu0 0
    %72 = vmatprep.subr.bf16.mxu0 0
    %73 = vmatpush1.bf16.msra.mxu0 0
    %74 = vmatprep.subr.bf16.mxu0 0
    %75 = vmatpush1.bf16.msra.mxu0 0
    %76 = vmatprep.subr.bf16.mxu0 0
    %77 = vmatpush1.bf16.msra.mxu0 0
    %78 = vmatprep.subr.bf16.mxu0 0
    %79 = vmatpush1.bf16.msra.mxu0 0
    %80 = vmatprep.subr.bf16.mxu0 0
    %81 = vmatpush1.bf16.msra.mxu0 0
    %82 = vmatprep.subr.bf16.mxu0 0
    %83 = vmatpush1.bf16.msra.mxu0 0
    %84 = vmatprep.subr.bf16.mxu0 0
    %85 = vmatpush1.bf16.msra.mxu0 0
    %86 = vmatprep.subr.bf16.mxu0 0
    %87 = vmatpush1.bf16.msra.mxu0 0
    %88 = vmatprep.mubr.bf16.mxu0 0
    %89 = vmatmul.mubr.bf16.gmra.mrb[0].mxu0 %v50
    %v90 = vpop.f32.mrb[0].mxu0
    %v91 = vadd.f32 %v31, %v90
    %v92 = vpop.f32.mrb[0].mxu0
    %v93 = vpop.f32.mrb[0].mxu0
    %v94 = vadd.f32 %v36, %v93
    %v95 = vpop.f32.mrb[0].mxu0
    %96 = vdwg.mxu0
    %v97 = vmax.f32 %v91, 0.0
    %v98 = vmax.f32 %v94, 0.0
    %v99 = vpack.c.bf16 %v98, %v97
    %v100 = vld [vmem:[%s3] sm:$0x1]
    %v101 = vld [vmem:[%s4] sm:$0x3]
    %103 = vset.pattern.permute.xlu0 0
    %104 = vperm.xlu0 %103, %v101
    %v105 = vpop.permute.xlu0 %104
    %vm107 = vcmask 121856
    %v109 = vsel %vm107, %v100, 0
    %vm111 = vcmask 1046528
    %vm112 = vcmask 1047552
    %v113 = vsel %vm111, 4294967295, 65535
    %v114 = vsel %vm112, %v113, 0
    %v116 = vand.u32 %v99, %v114
    %118 = vmatprep.subr.bf16.mxu0 0
    %119 = vmatpush1.bf16.msra.mxu0 %v116
    %120 = vmatprep.subr.bf16.mxu0 0
    %121 = vmatpush1.bf16.msra.mxu0 0
    %122 = vmatprep.subr.bf16.mxu0 0
    %123 = vmatpush1.bf16.msra.mxu0 0
    %124 = vmatprep.subr.bf16.mxu0 0
    %125 = vmatpush1.bf16.msra.mxu0 0
    %126 = vmatprep.subr.bf16.mxu0 0
    %127 = vmatpush1.bf16.msra.mxu0 0
    %128 = vmatprep.subr.bf16.mxu0 0
    %129 = vmatpush1.bf16.msra.mxu0 0
    %130 = vmatprep.subr.bf16.mxu0 0
    %131 = vmatpush1.bf16.msra.mxu0 0
    %132 = vmatprep.subr.bf16.mxu0 0
    %133 = vmatpush1.bf16.msra.mxu0 0
    %134 = vmatprep.subr.bf16.mxu0 0
    %135 = vmatpush1.bf16.msra.mxu0 0
    %136 = vmatprep.subr.bf16.mxu0 0
    %137 = vmatpush1.bf16.msra.mxu0 0
    %138 = vmatprep.subr.bf16.mxu0 0
    %139 = vmatpush1.bf16.msra.mxu0 0
    %140 = vmatprep.subr.bf16.mxu0 0
    %141 = vmatpush1.bf16.msra.mxu0 0
    %142 = vmatprep.subr.bf16.mxu0 0
    %143 = vmatpush1.bf16.msra.mxu0 0
    %144 = vmatprep.subr.bf16.mxu0 0
    %145 = vmatpush1.bf16.msra.mxu0 0
    %146 = vmatprep.subr.bf16.mxu0 0
    %147 = vmatpush1.bf16.msra.mxu0 0
    %148 = vmatprep.subr.bf16.mxu0 0
    %149 = vmatpush1.bf16.msra.mxu0 0
    %150 = vmatprep.mubr.bf16.mxu0 0
    %151 = vmatmul.mubr.bf16.gmra.mrb[0].mxu0 %v109
    %v152 = vpop.f32.mrb[0].mxu0
    %v153 = vadd.f32 %v105, %v152
    %v154 = vpop.f32.mrb[0].mxu0
    %v155 = vpop.f32.mrb[0].mxu0
    %v156 = vpop.f32.mrb[0].mxu0
    %157 = vdwg.mxu0
    %158 = vst [vmem:[#allocation2] sm:$0x3] %v153
    // Predicated region
    $region22: #{tpu_custom_call.1} parent=1 // pred_check
      _
    $region23: #{tpu_custom_call.1} parent=1 // pred_check_branch
      %160 = sbr.rel (0) target = $region25
    $region24: #{tpu_custom_call.1} parent=1 // pred_region
      %s162 = ssub.s32 32, 32
      %163 = vsyncadd [#allocation3], %s162
      %s165 = sshll.u32 [#allocation2], 4
      %s166 = int_to_ptr.vmem [resolvable:$true] %s165
      %168 = dma.vmem_to_hbm [thread:$0]  %s166, 32, %s5, [#allocation3]
    $region25: #{tpu_custom_call.1} parent=1 // pred_fallthru
      _
    // Predicated region
    $region26: #{tpu_custom_call.1} parent=1 // pred_check
      _
    $region27: #{tpu_custom_call.1} parent=1 // pred_check_branch
      %170 = sbr.rel (0) target = $region29
    $region28: #{tpu_custom_call.1} parent=1 // pred_region
      %171 = dma.done [#allocation3], 32
    $region29: #{tpu_custom_call.1} parent=1 // pred_fallthru
      _
    %172 = vsyncpa [#allocation3], 1

</llo_original>
